<compile_context>
chip_gen: v7x
topology: tpu7x:2x2x1
jax: 0.10.0
libtpu: 0.0.40
codegen_flags: <defaults>
</compile_context>

<pallas_src>
import functools

import jax
import jax.numpy as jnp
from jax import lax
from jax.experimental import pallas as pl
from jax.experimental.pallas import tpu as pltpu

NUM_CLASSES = 2
EPS = 1e-6
_LANES = 128
_CHUNK_ROWS = 512       # rows per in-kernel chunk (bounds VMEM temporaries)


def _default_target_tile_rows():
    """Rows per grid step: 2048 (v5e/v6e), 4096 (v7x, ~3.2 TB/s per TC)."""
    try:
        kind = jax.devices()[0].device_kind.lower()
    except Exception:  # no devices visible / interpret mode
        kind = ""
    return 4096 if ("v7" in kind or "tpu7" in kind) else 2048


def _dice_sums_kernel(x_ref, lab_ref, acc_ref, *, num_classes, tile_rows,
                      chunk_rows, tiles_per_split, num_tiles, dhw, needs_mask):
    """Per-tile softmax + one-hot + lane-wise partial reductions.

    x_ref:   (C, TR, 128)  logits tile (any float dtype; upcast per chunk)
    lab_ref: (TR, 128)     integer labels tile
    acc_ref: (K, 128)      f32 accumulators, resident across the row-tile
                           ("arbitrary") grid axis of the current (sample,
                           split).  K = 4 for the C == 2 fast path
                           (sum p1*[lab==1], sum p1, n0, n1), else 2*C
                           (per-class intersection then cardinality partials).
    """
    split = pl.program_id(1)
    tile = pl.program_id(2)

    @pl.when(tile == 0)
    def _():
        acc_ref[...] = jnp.zeros_like(acc_ref)

    # Global row-tile index of this grid step (splits are contiguous ranges).
    g = split * tiles_per_split + tile

    # Static per-channel ref views (zero-cost).
    ch_refs = [x_ref.at[c] for c in range(num_classes)]

    def process(masked):
        def do_chunk(r0, cr):
            lab = lab_ref[pl.ds(r0, cr), :]

            if masked:
                # Validity from the global flat pixel index, never from label
                # values: the ragged tail rows of the last tile hold
                # unspecified bytes that can alias real class ids.
                # (int32 is enough: DHW < 2^31 for any addressable volume.)
                row = lax.broadcasted_iota(jnp.int32, (cr, _LANES), 0)
                lane = lax.broadcasted_iota(jnp.int32, (cr, _LANES), 1)
                base = (g * tile_rows + r0) * _LANES
                valid = (base + row * _LANES + lane) < dhw
            else:
                valid = None

            if num_classes == 2:
                # softmax over 2 classes == logistic of the logit difference:
                # no cross-sublane reductions, one EUP exp per pixel.
                x0 = ch_refs[0][pl.ds(r0, cr), :].astype(jnp.float32)
                x1 = ch_refs[1][pl.ds(r0, cr), :].astype(jnp.float32)
                p1 = 1.0 / (1.0 + jnp.exp(x0 - x1))
                is0 = lab == 0
                is1 = lab == 1
                if valid is not None:
                    p1 = jnp.where(valid, p1, 0.0)   # NaN-safe vs garbage tail
                    is0 = jnp.logical_and(is0, valid)
                    is1 = jnp.logical_and(is1, valid)
                oh0 = is0.astype(jnp.float32)
                oh1 = is1.astype(jnp.float32)
                parts = [
                    jnp.sum(p1 * oh1, axis=0, keepdims=True),   # sum p1*[lab==1]
                    jnp.sum(p1, axis=0, keepdims=True),         # sum p1
                    jnp.sum(oh0, axis=0, keepdims=True),        # n0
                    jnp.sum(oh1, axis=0, keepdims=True),        # n1
                ]
            else:
                xs = [ch_refs[c][pl.ds(r0, cr), :].astype(jnp.float32)
                      for c in range(num_classes)]
                m = xs[0]
                for xc in xs[1:]:
                    m = jnp.maximum(m, xc)
                es = [jnp.exp(xc - m) for xc in xs]
                den = es[0]
                for e in es[1:]:
                    den = den + e
                inv = 1.0 / den
                inter_parts, card_parts = [], []
                for c in range(num_classes):
                    p = es[c] * inv
                    ohb = lab == c
                    if valid is not None:
                        p = jnp.where(valid, p, 0.0)
                        ohb = jnp.logical_and(ohb, valid)
                    oh = ohb.astype(jnp.float32)
                    inter_parts.append(jnp.sum(p * oh, axis=0, keepdims=True))
                    card_parts.append(jnp.sum(p + oh, axis=0, keepdims=True))
                parts = inter_parts + card_parts

            acc_ref[...] += jnp.concatenate(parts, axis=0)      # (K, 128)

        n_full = tile_rows // chunk_rows
        tail = tile_rows - n_full * chunk_rows

        def body(i, carry):
            do_chunk(pl.multiple_of(i * chunk_rows, chunk_rows), chunk_rows)
            return carry

        lax.fori_loop(0, n_full, body, 0)
        if tail:
            do_chunk(n_full * chunk_rows, tail)

    if needs_mask:
        # Only the globally-last tile can contain invalid pixels (the ragged
        # Pallas block and/or the sub-128 lane pad); full tiles pay nothing.
        is_last = g == num_tiles - 1

        @pl.when(jnp.logical_not(is_last))
        def _():
            process(False)

        @pl.when(is_last)
        def _():
            process(True)
    else:
        process(False)


@functools.partial(jax.jit, static_argnames=("target_tile_rows",))
def dice_loss(outputs, labels, *, target_tile_rows=None):
    """outputs: (N, C, D, H, W) float logits; labels: (N, 1, D, H, W) ints in [0, C)."""
    N, C, D, H, W = outputs.shape
    dhw = D * H * W

    if target_tile_rows is None:
        target_tile_rows = _default_target_tile_rows()
    # Cap so one (double-buffered) logits block stays ~<=4 MiB for any C/dtype.
    row_bytes = C * _LANES * outputs.dtype.itemsize
    cap = max(512, ((4 * 1024 * 1024) // row_bytes) // 32 * 32)
    target_tile_rows = min(target_tile_rows, cap)

    # Keep incoming dtypes (bf16 logits / int8 labels are consumed as-is).
    lab = labels.reshape(N, dhw)
    if not jnp.issubdtype(lab.dtype, jnp.integer):
        lab = lab.astype(jnp.int32)
    x = outputs.reshape(N, C, dhw)

    # Lane-dense layout: pixels -> (rows, 128). Only pad DHW up to the next
    # multiple of 128 (needed for the reshape); the ragged last row-tile is
    # masked inside the kernel, so there is no full tile_rows*128 pad copy.
    rows = pl.cdiv(dhw, _LANES)
    dhw_128 = rows * _LANES
    if dhw_128 != dhw:
        # TODO(synk): this lane-alignment pad still copies the inputs once in
        # HBM; volumes with DHW % 128 == 0 skip it entirely.
        x = jnp.pad(x, ((0, 0), (0, 0), (0, dhw_128 - dhw)))
        lab = jnp.pad(lab, ((0, 0), (0, dhw_128 - dhw)))
    x = x.reshape(N, C, rows, _LANES)
    lab = lab.reshape(N, rows, _LANES)

    # Tile selection: multiples of 32 (f32/bf16/int8 sublane packing) unless a
    # single tile covers the whole row extent (full-dim blocks are exempt).
    if rows > target_tile_rows:
        tile_rows = max(32, (target_tile_rows // 32) * 32)
    else:
        tile_rows = rows
    chunk_rows = min(_CHUNK_ROWS, tile_rows)
    num_tiles = pl.cdiv(rows, tile_rows)

    # Second "parallel" axis so a v7x megacore can split the pixel stream even
    # when N == 1.  TODO(synk): odd tile counts fall back to a single split.
    num_splits = 2 if (num_tiles % 2 == 0 and num_tiles >= 2) else 1
    tiles_per_split = num_tiles // num_splits

    needs_mask = dhw != num_tiles * tile_rows * _LANES
    k_stats = 4 if C == 2 else 2 * C

    kernel = functools.partial(
        _dice_sums_kernel, num_classes=C, tile_rows=tile_rows,
        chunk_rows=chunk_rows, tiles_per_split=tiles_per_split,
        num_tiles=num_tiles, dhw=dhw, needs_mask=needs_mask)

    acc = pl.pallas_call(
        kernel,
        out_shape=jax.ShapeDtypeStruct((N, num_splits, k_stats, _LANES),
                                       jnp.float32),
        grid_spec=pltpu.PrefetchScalarGridSpec(
            num_scalar_prefetch=0,
            grid=(N, num_splits, tiles_per_split),
            in_specs=[
                # (None, ...) squeezes the batch dim out of the kernel view.
                pl.BlockSpec((None, C, tile_rows, _LANES),
                             lambda n, s, t: (n, 0, s * tiles_per_split + t, 0)),
                pl.BlockSpec((None, tile_rows, _LANES),
                             lambda n, s, t: (n, s * tiles_per_split + t, 0)),
            ],
            out_specs=pl.BlockSpec((None, None, k_stats, _LANES),
                                   lambda n, s, t: (n, s, 0, 0)),
        ),
        compiler_params=pltpu.CompilerParams(
            dimension_semantics=("parallel", "parallel", "arbitrary"),
            vmem_limit_bytes=32 * 1024 * 1024,
        ),
    )(x, lab)

    # Tiny final reductions (N * splits * K * 128 floats) outside the hot loop.
    stats = jnp.sum(acc, axis=(0, 1, 3))                  # (K,)
    if C == 2:
        s_p1oh1, s_p1, n0, n1 = stats[0], stats[1], stats[2], stats[3]
        inter_c = jnp.stack([n0 - (s_p1 - s_p1oh1), s_p1oh1])
        card_c = jnp.stack([(n0 + n1 - s_p1) + n0, s_p1 + n1])
    else:
        inter_c = stats[:C]
        card_c = stats[C:]
    dice_score = (2.0 * inter_c + EPS) / (card_c + EPS)
    return jnp.mean(1.0 - dice_score)


def _dice_loss_ref(outputs, labels):
    """Pure-JAX reference mirroring the PyTorch module."""
    num_classes = outputs.shape[1]
    probs = jax.nn.softmax(outputs.astype(jnp.float32), axis=1)
    lab = labels[:, 0].astype(jnp.int32)                  # (N, D, H, W)
    one_hot = jax.nn.one_hot(lab, num_classes, dtype=jnp.float32)
    one_hot = jnp.transpose(one_hot, (0, 4, 1, 2, 3))     # (N, C, D, H, W)
    dims = (0, 2, 3, 4)
    inter = jnp.sum(probs * one_hot, axis=dims)
    card = jnp.sum(probs + one_hot, axis=dims)
    dice = (2.0 * inter + EPS) / (card + EPS)
    return jnp.mean(1.0 - dice)


if __name__ == "__main__":
    key = jax.random.PRNGKey(0)
    k1, k2, k3, k4 = jax.random.split(key, 4)

    # Small lane-aligned volume (DHW = 256): single tile, no masking path.
    n, c, d, h, w = 2, NUM_CLASSES, 4, 8, 8
    outputs = jax.random.normal(k1, (n, c, d, h, w), dtype=jnp.float32)
    labels = jax.random.randint(k2, (n, 1, d, h, w), 0, NUM_CLASSES,
                                dtype=jnp.int32)
    loss = dice_loss(outputs, labels)
    jax.block_until_ready(loss)
    ref = _dice_loss_ref(outputs, labels)
    assert jnp.allclose(loss, ref, atol=1e-5, rtol=1e-4), (loss, ref)

    # Ragged volume (DHW = 7*41*45 = 12915): exercises the lane pad, the
    # in-kernel flat-index mask on the last tile, multi-tile accumulation and
    # the 2-way "parallel" pixel-stream split.
    d2, h2, w2 = 7, 41, 45
    outputs2 = jax.random.normal(k3, (n, c, d2, h2, w2), dtype=jnp.float32)
    labels2 = jax.random.randint(k4, (n, 1, d2, h2, w2), 0, NUM_CLASSES,
                                 dtype=jnp.int32)
    loss2 = dice_loss(outputs2, labels2, target_tile_rows=32)
    jax.block_until_ready(loss2)
    ref2 = _dice_loss_ref(outputs2, labels2)
    assert jnp.allclose(loss2, ref2, atol=1e-5, rtol=1e-4), (loss2, ref2)

    print("KERNEL_OK")
</pallas_src>

<mosaic_0001>
module attributes {stable_mosaic.version = 11 : i64} {
  func.func @_dice_sums_kernel(%arg0: i32, %arg1: i32, %arg2: i32, %arg3: memref<1x2x2x128xf32, #tpu.memory_space<vmem>>, %arg4: memref<1x2x128xi32, #tpu.memory_space<vmem>>, %arg5: memref<1x1x4x128xf32, #tpu.memory_space<vmem>>) attributes {dimension_semantics = [#tpu.dimension_semantics<parallel>, #tpu.dimension_semantics<parallel>, #tpu.dimension_semantics<arbitrary>], iteration_bounds = array<i64: 2, 1, 1>, scalar_prefetch = 0 : i64, scratch_operands = 0 : i64, tpu.core_type = #tpu.core_type<tc>, window_params = [{transform_indices = @transform_0, window_bounds = array<i64: 1, 2, 2, 128>}, {transform_indices = @transform_1, window_bounds = array<i64: 1, 2, 128>}, {transform_indices = @transform_2, window_bounds = array<i64: 1, 1, 4, 128>}]} {
    %c0_i32 = arith.constant 0 : i32
    %0 = arith.cmpi eq, %arg2, %c0_i32 : i32
    %1 = arith.extui %0 : i1 to i32
    %c0_i32_0 = arith.constant 0 : i32
    %2 = arith.cmpi ne, %1, %c0_i32_0 : i32
    scf.if %2 {
      %cst_28 = arith.constant 0.000000e+00 : f32
      %46 = vector.broadcast %cst_28 : f32 to vector<4x128xf32>
      %c0_29 = arith.constant 0 : index
      %c0_30 = arith.constant 0 : index
      %c0_31 = arith.constant 0 : index
      %c0_32 = arith.constant 0 : index
      %47 = vector.load %arg5[%c0_29, %c0_30, %c0_31, %c0_32] : memref<1x1x4x128xf32, #tpu.memory_space<vmem>>, vector<1x1x4x128xf32>
      %48 = vector.shape_cast %47 : vector<1x1x4x128xf32> to vector<4x128xf32>
      %49 = vector.shape_cast %46 : vector<4x128xf32> to vector<1x1x4x128xf32>
      tpu.vector_store %arg5[%c0_29, %c0_30, %c0_31, %c0_32], %49 {strides = array<i32>} : memref<1x1x4x128xf32, #tpu.memory_space<vmem>>, vector<1x1x4x128xf32>,
    } else {
    }
    %c0_i32_1 = arith.constant 0 : i32
    %c1_i32 = arith.constant 1 : i32
    %c0_i32_2 = arith.constant 0 : i32
    %c2_i32 = arith.constant 2 : i32
    %3 = arith.muli %c0_i32_2, %c2_i32 : i32
    %4 = tpu.assume_multiple %3, 2 : i32
    %c0 = arith.constant 0 : index
    %5 = arith.index_cast %4 : i32 to index
    %c0_3 = arith.constant 0 : index
    %6 = vector.load %arg4[%c0, %5, %c0_3] : memref<1x2x128xi32, #tpu.memory_space<vmem>>, vector<1x2x128xi32>
    %7 = vector.shape_cast %6 : vector<1x2x128xi32> to vector<2x128xi32>
    %c0_i32_4 = arith.constant 0 : i32
    %c0_i32_5 = arith.constant 0 : i32
    %c0_i32_6 = arith.constant 0 : i32
    %8 = tpu.memref_slice %arg3[%c0_i32_4, %c0_i32_1, %c0_i32_5, %c0_i32_6] : memref<1x2x2x128xf32, #tpu.memory_space<vmem>> -> memref<1x1x2x128xf32, #tpu.memory_space<vmem>>
    %9 = tpu.memref_squeeze %8 : memref<1x1x2x128xf32, #tpu.memory_space<vmem>> -> memref<2x128xf32, #tpu.memory_space<vmem>>
    %10 = arith.index_cast %4 : i32 to index
    %c0_7 = arith.constant 0 : index
    %11 = vector.load %9[%10, %c0_7] : memref<2x128xf32, #tpu.memory_space<vmem>>, vector<2x128xf32>
    %c0_i32_8 = arith.constant 0 : i32
    %c0_i32_9 = arith.constant 0 : i32
    %c0_i32_10 = arith.constant 0 : i32
    %12 = tpu.memref_slice %arg3[%c0_i32_8, %c1_i32, %c0_i32_9, %c0_i32_10] : memref<1x2x2x128xf32, #tpu.memory_space<vmem>> -> memref<1x1x2x128xf32, #tpu.memory_space<vmem>>
    %13 = tpu.memref_squeeze %12 : memref<1x1x2x128xf32, #tpu.memory_space<vmem>> -> memref<2x128xf32, #tpu.memory_space<vmem>>
    %14 = arith.index_cast %4 : i32 to index
    %c0_11 = arith.constant 0 : index
    %15 = vector.load %13[%14, %c0_11] : memref<2x128xf32, #tpu.memory_space<vmem>>, vector<2x128xf32>
    %16 = arith.subf %11, %15 : vector<2x128xf32>
    %17 = math.exp %16 : vector<2x128xf32>
    %cst = arith.constant 1.000000e+00 : f32
    %18 = vector.broadcast %cst : f32 to vector<2x128xf32>
    %19 = arith.addf %18, %17 : vector<2x128xf32>
    %cst_12 = arith.constant 1.000000e+00 : f32
    %20 = vector.broadcast %cst_12 : f32 to vector<2x128xf32>
    %21 = arith.divf %20, %19 : vector<2x128xf32>
    %c0_i32_13 = arith.constant 0 : i32
    %22 = vector.broadcast %c0_i32_13 : i32 to vector<2x128xi32>
    %23 = arith.cmpi eq, %7, %22 : vector<2x128xi32>
    %c1_i32_14 = arith.constant 1 : i32
    %24 = vector.broadcast %c1_i32_14 : i32 to vector<2x128xi32>
    %25 = arith.cmpi eq, %7, %24 : vector<2x128xi32>
    %26 = arith.extui %23 : vector<2x128xi1> to vector<2x128xi32>
    %27 = arith.sitofp %26 : vector<2x128xi32> to vector<2x128xf32>
    %28 = arith.extui %25 : vector<2x128xi1> to vector<2x128xi32>
    %29 = arith.sitofp %28 : vector<2x128xi32> to vector<2x128xf32>
    %30 = arith.mulf %21, %29 : vector<2x128xf32>
    %cst_15 = arith.constant dense<0.000000e+00> : vector<128xf32>
    %31 = vector.multi_reduction <add>, %30, %cst_15 [0] : vector<2x128xf32> to vector<128xf32>
    %32 = vector.shape_cast %31 : vector<128xf32> to vector<1x128xf32>
    %cst_16 = arith.constant dense<0.000000e+00> : vector<128xf32>
    %33 = vector.multi_reduction <add>, %21, %cst_16 [0] : vector<2x128xf32> to vector<128xf32>
    %34 = vector.shape_cast %33 : vector<128xf32> to vector<1x128xf32>
    %cst_17 = arith.constant dense<0.000000e+00> : vector<128xf32>
    %35 = vector.multi_reduction <add>, %27, %cst_17 [0] : vector<2x128xf32> to vector<128xf32>
    %36 = vector.shape_cast %35 : vector<128xf32> to vector<1x128xf32>
    %cst_18 = arith.constant dense<0.000000e+00> : vector<128xf32>
    %37 = vector.multi_reduction <add>, %29, %cst_18 [0] : vector<2x128xf32> to vector<128xf32>
    %38 = vector.shape_cast %37 : vector<128xf32> to vector<1x128xf32>
    %c0_19 = arith.constant 0 : index
    %c0_20 = arith.constant 0 : index
    %c0_21 = arith.constant 0 : index
    %c0_22 = arith.constant 0 : index
    %39 = vector.load %arg5[%c0_19, %c0_20, %c0_21, %c0_22] : memref<1x1x4x128xf32, #tpu.memory_space<vmem>>, vector<1x1x4x128xf32>
    %40 = vector.shape_cast %39 : vector<1x1x4x128xf32> to vector<4x128xf32>
    %41 = tpu.concatenate %32, %34, %36, %38 in 0 : vector<1x128xf32>, vector<1x128xf32>, vector<1x128xf32>, vector<1x128xf32> -> vector<4x128xf32>
    %42 = arith.addf %40, %41 : vector<4x128xf32>
    %c0_23 = arith.constant 0 : index
    %c0_24 = arith.constant 0 : index
    %c0_25 = arith.constant 0 : index
    %c0_26 = arith.constant 0 : index
    %43 = vector.load %arg5[%c0_23, %c0_24, %c0_25, %c0_26] : memref<1x1x4x128xf32, #tpu.memory_space<vmem>>, vector<1x1x4x128xf32>
    %44 = vector.shape_cast %43 : vector<1x1x4x128xf32> to vector<4x128xf32>
    %45 = vector.shape_cast %42 : vector<4x128xf32> to vector<1x1x4x128xf32>
    tpu.vector_store %arg5[%c0_23, %c0_24, %c0_25, %c0_26], %45 {strides = array<i32>} : memref<1x1x4x128xf32, #tpu.memory_space<vmem>>, vector<1x1x4x128xf32>,
    %c1_i32_27 = arith.constant 1 : i32
    return
  }
  func.func @transform_0(%arg0: i32, %arg1: i32, %arg2: i32) -> (i32, i32, i32, i32) {
    %c1_i32 = arith.constant 1 : i32
    %0 = arith.muli %arg1, %c1_i32 : i32
    %1 = arith.addi %0, %arg2 : i32
    %c0_i32 = arith.constant 0 : i32
    %c0_i32_0 = arith.constant 0 : i32
    %c0_i32_1 = arith.constant 0 : i32
    return %arg0, %c0_i32, %1, %c0_i32_0 : i32, i32, i32, i32
  }
  func.func @transform_1(%arg0: i32, %arg1: i32, %arg2: i32) -> (i32, i32, i32) {
    %c1_i32 = arith.constant 1 : i32
    %0 = arith.muli %arg1, %c1_i32 : i32
    %1 = arith.addi %0, %arg2 : i32
    %c0_i32 = arith.constant 0 : i32
    %c0_i32_0 = arith.constant 0 : i32
    return %arg0, %1, %c0_i32 : i32, i32, i32
  }
  func.func @transform_2(%arg0: i32, %arg1: i32, %arg2: i32) -> (i32, i32, i32, i32) {
    %c0_i32 = arith.constant 0 : i32
    %c0_i32_0 = arith.constant 0 : i32
    %c0_i32_1 = arith.constant 0 : i32
    return %arg0, %arg1, %c0_i32, %c0_i32_0 : i32, i32, i32, i32
  }
}

</mosaic_0001>

<llo_original>
// kernel: dice_loss.1
$region0: #{dice_loss.1}
  #allocation0 [shape = 'u32[]', space=smem, size = 0x4, offset = 0x4, fixed_abs, tag = 'smem constant byte address 0x4 - core index']
  #allocation1 [shape = 'u32[144,128]{1,0:T(1,128)}', space=vmem, size = 0x12000, scoped, tag = 'internal scratch']
  %s0 = inlined_call_operand.vmem [shape: f32[2,2,2,128], index: 0, kind: input, shape index: {}]
  %s1 = inlined_call_operand.vmem [shape: s32[2,2,128], index: 1, kind: input, shape index: {}]
  %s2 = inlined_call_operand.vmem [shape: f32[2,1,4,128], index: 2, kind: output, shape index: {}]
  %s3 = sld [smem:[#allocation0]]
  $region45: #{dice_loss.1} parent=0
    _
  %s5 = ssub.s32 1, %s3
  %s6 = scalar_select 0, %s5, %s3
  loop: start=0, step=1, limit=4
  $region2: #{dice_loss.1} parent=0 // loop_pre_header
    _
  $region3: #{dice_loss.1} parent=0 // loop_header
    %s8 = sphi 0, %s12
    %p9 = scmp.ge.s32.totalorder %s8, 4
    %s15 = sphi 0, %s34
    %s16 = sphi 0, %s30
    %s17 = sphi 0, %s26
    %s18 = sphi 0, %s15
    %s19 = sphi 0, %s16
    %s20 = sphi 0, %s17
    %s21 = sphi 0, %s18
    %s22 = sphi 0, %s19
    %s23 = sphi 0, %s20
    %s41 = sphi 0, %s43
    %s44 = sphi 0, %s41
    %s45 = sphi 0, %s44
    %s61 = sphi 0, %s45
    %s71 = sphi 0, %s73
    %s74 = sphi 0, %s71
    %s75 = sphi 0, %s74
    %s91 = sphi 0, %s75
    %s99 = sphi 0, %s101
    %s102 = sphi 0, %s99
    %s103 = sphi 0, %s102
    %s119 = sphi 0, %s103
  $region4: #{dice_loss.1} parent=0 // loop_header_branch
    %11 = sbr.rel (%p9) target = $region8
  $region5: #{dice_loss.1} parent=0 // loop_body
    %s13 = ssub.s32 %s8, 1
    %s14 = ssub.s32 %s8, 2
    %s24 = sadd.s32 1, %s17
    %p25 = scmp.ge.s32.totalorder %s24, 1
    %s26 = scalar_select %p25, 0, %s24
    %s27 = sadd.s32 1, %s16
    %s28 = scalar_select %p25, %s27, %s16
    %p29 = scmp.ge.s32.totalorder %s28, 1
    %s30 = scalar_select %p29, 0, %s28
    %s31 = sadd.s32 1, %s15
    %s32 = scalar_select %p29, %s31, %s15
    %p33 = scmp.ge.s32.totalorder %s32, 2
    %s34 = scalar_select %p33, 0, %s32
    %s35 = sadd.s32 %s16, %s17
    %s36 = sadd.s32 %s30, %s26
    %s37 = ssub.s32 %s15, %s34
    %s38 = ssub.s32 %s35, %s36
    %s39 = sor.u32 %s37, %s38
    %p40 = scmp.eq.s32.totalorder %s39, 0
    %s42 = sadd.s32 %s41, 1
    %s43 = scalar_select %p40, %s41, %s42
    %p46 = pneg %p40
    %p47 = scmp.eq.s32.totalorder %s8, 1
    %p48 = por %p46, %p47
    %p49 = scmp.ne.s32.totalorder %s41, %s44
    %p50 = scmp.eq.s32.totalorder %s8, 0
    %p51 = por %p49, %p50
    %p52 = scmp.ne.s32.totalorder %s41, %s44
    %p53 = scmp.eq.s32.totalorder %s13, 1
    %p54 = por %p52, %p53
    %p55 = scmp.ne.s32.totalorder %s44, %s45
    %p56 = scmp.eq.s32.totalorder %s13, 0
    %p57 = por %p55, %p56
    %p58 = scmp.ne.s32.totalorder %s44, %s45
    %p59 = scmp.eq.s32.totalorder %s14, 1
    %p60 = por %p58, %p59
    %p62 = scmp.ne.s32.totalorder %s45, %s61
    %p63 = scmp.eq.s32.totalorder %s14, 0
    %p64 = por %p62, %p63
    %s65 = sadd.s32 %s16, %s17
    %s66 = sadd.s32 %s30, %s26
    %s67 = ssub.s32 %s15, %s34
    %s68 = ssub.s32 %s65, %s66
    %s69 = sor.u32 %s67, %s68
    %p70 = scmp.eq.s32.totalorder %s69, 0
    %s72 = sadd.s32 %s71, 1
    %s73 = scalar_select %p70, %s71, %s72
    %p76 = pneg %p70
    %p77 = scmp.eq.s32.totalorder %s8, 1
    %p78 = por %p76, %p77
    %p79 = scmp.ne.s32.totalorder %s71, %s74
    %p80 = scmp.eq.s32.totalorder %s8, 0
    %p81 = por %p79, %p80
    %p82 = scmp.ne.s32.totalorder %s71, %s74
    %p83 = scmp.eq.s32.totalorder %s13, 1
    %p84 = por %p82, %p83
    %p85 = scmp.ne.s32.totalorder %s74, %s75
    %p86 = scmp.eq.s32.totalorder %s13, 0
    %p87 = por %p85, %p86
    %p88 = scmp.ne.s32.totalorder %s74, %s75
    %p89 = scmp.eq.s32.totalorder %s14, 1
    %p90 = por %p88, %p89
    %p92 = scmp.ne.s32.totalorder %s75, %s91
    %p93 = scmp.eq.s32.totalorder %s14, 0
    %p94 = por %p92, %p93
    %s95 = ssub.s32 %s15, %s34
    %s96 = ssub.s32 %s16, %s30
    %s97 = sor.u32 %s95, %s96
    %p98 = scmp.eq.s32.totalorder %s97, 0
    %s100 = sadd.s32 %s99, 1
    %s101 = scalar_select %p98, %s99, %s100
    %p104 = pneg %p98
    %p105 = scmp.eq.s32.totalorder %s8, 1
    %p106 = por %p104, %p105
    %p107 = scmp.ne.s32.totalorder %s99, %s102
    %p108 = scmp.eq.s32.totalorder %s8, 0
    %p109 = por %p107, %p108
    %p110 = scmp.ne.s32.totalorder %s99, %s102
    %p111 = scmp.eq.s32.totalorder %s13, 1
    %p112 = por %p110, %p111
    %p113 = scmp.ne.s32.totalorder %s102, %s103
    %p114 = scmp.eq.s32.totalorder %s13, 0
    %p115 = por %p113, %p114
    %p116 = scmp.ne.s32.totalorder %s102, %s103
    %p117 = scmp.eq.s32.totalorder %s14, 1
    %p118 = por %p116, %p117
    %p120 = scmp.ne.s32.totalorder %s103, %s119
    %p121 = scmp.eq.s32.totalorder %s14, 0
    %p122 = por %p120, %p121
    %p123 = scmp.le.s32.totalorder 1, %s8
    %p124 = scmp.lt.s32.totalorder %s8, 3
    %p125 = pnand %p123, %p124
    %p126 = pneg %p125
    // Predicated region
    $region9: #{dice_loss.1} parent=5 // pred_check
      _
    $region10: #{dice_loss.1} parent=5 // pred_check_branch
      %128 = sbr.rel (%p125) target = $region12
    $region11: #{dice_loss.1} parent=5 // pred_region
      %s129 = ssub.s32 %s8, 1
    $region12: #{dice_loss.1} parent=5 // pred_fallthru
      _
    %p130 = scmp.lt.s32.totalorder %s8, 2
    // Predicated region
    $region13: #{dice_loss.1} parent=5 // pred_check
      %p131 = pneg %p130
    $region14: #{dice_loss.1} parent=5 // pred_check_branch
      %133 = sbr.rel (%p131) target = $region16
    $region15: #{dice_loss.1} parent=5 // pred_region
      // Predicated region
      $region17: #{dice_loss.1} parent=15 // pred_check
        %p134 = pneg %p51
      $region18: #{dice_loss.1} parent=15 // pred_check_branch
        %136 = sbr.rel (%p134) target = $region20
      $region19: #{dice_loss.1} parent=15 // pred_region
        %s137 = sadd.s32 %s16, %s17
        %p138 = scmp.lt.s32.totalorder %s15, 1
        %s139 = scalar_select %p138, %s15, 1
        %p140 = scmp.lt.s32.totalorder %s137, 0
        %s141 = scalar_select %p140, %s137, 0
        %s142 = smul.addr %s139, 2
        %s143 = sadd.s32 %s141, %s142
        %s144 = smul.addr %s143, 2
        %s145 = scalar_lea.vmem %s0, %s144
        %s146 = sadd.s32 %s16, %s17
      $region20: #{dice_loss.1} parent=15 // pred_fallthru
        _
      // Predicated region
      $region21: #{dice_loss.1} parent=15 // pred_check
        %p147 = pneg %p81
      $region22: #{dice_loss.1} parent=15 // pred_check_branch
        %149 = sbr.rel (%p147) target = $region24
      $region23: #{dice_loss.1} parent=15 // pred_region
        %s150 = sadd.s32 %s16, %s17
        %p151 = scmp.lt.s32.totalorder %s15, 1
        %s152 = scalar_select %p151, %s15, 1
        %p153 = scmp.lt.s32.totalorder %s150, 0
        %s154 = scalar_select %p153, %s150, 0
        %s155 = sadd.s32 %s154, %s152
        %s156 = smul.addr %s155, 2
        %s157 = scalar_lea.vmem %s1, %s156
        %s158 = sadd.s32 %s16, %s17
      $region24: #{dice_loss.1} parent=15 // pred_fallthru
        _
    $region16: #{dice_loss.1} parent=5 // pred_fallthru
      _
    %p159 = scmp.le.s32.totalorder 1, %s8
    %p160 = scmp.lt.s32.totalorder %s8, 3
    %p161 = pnand %p159, %p160
    %p162 = pneg %p161
    // Predicated region
    $region25: #{dice_loss.1} parent=5 // pred_check
      _
    $region26: #{dice_loss.1} parent=5 // pred_check_branch
      %164 = sbr.rel (%p161) target = $region28
    $region27: #{dice_loss.1} parent=5 // pred_region
      %s165 = ssub.s32 %s8, 1
      %s166 = sadd.s32 %s19, %s20
      %p167 = scmp.lt.s32.totalorder %s18, 1
      %s168 = scalar_select %p167, %s18, 1
      %p169 = scmp.lt.s32.totalorder %s166, 0
      %s170 = scalar_select %p169, %s166, 0
      %s171 = smul.addr %s168, 2
      %s172 = sadd.s32 %s170, %s171
      %s173 = smul.addr %s172, 2
      %s174 = scalar_lea.vmem %s0, %s173
      %p175 = pneg %p57
      %p176 = pneg %p54
      %s177 = sadd.s32 %s19, %s20
      %p178 = scmp.lt.s32.totalorder %s18, 1
      %s179 = scalar_select %p178, %s18, 1
      %p180 = scmp.lt.s32.totalorder %s177, 0
      %s181 = scalar_select %p180, %s177, 0
      %s182 = sadd.s32 %s181, %s179
      %s183 = smul.addr %s182, 2
      %s184 = scalar_lea.vmem %s1, %s183
      %p185 = pneg %p87
      %p186 = pneg %p84
      %p187 = pneg %p115
      %p188 = pneg %p112
      %p189 = scmp.lt.s32.totalorder %s18, 1
      %s190 = scalar_select %p189, %s18, 1
      %p191 = scmp.lt.s32.totalorder %s19, 0
      %s192 = scalar_select %p191, %s19, 0
      %s193 = sadd.s32 %s192, %s190
      %s194 = smul.addr %s193, 4
      %s195 = scalar_lea.vmem %s2, %s194
      %s196 = sadd.s32 %s19, %s20
      %p197 = scmp.lt.s32.totalorder %s18, 1
      %s198 = scalar_select %p197, %s18, 1
      %p199 = scmp.lt.s32.totalorder %s196, 0
      %s200 = scalar_select %p199, %s196, 0
      %s201 = smul.addr %s198, 2
      %s202 = sadd.s32 %s200, %s201
      %s203 = smul.addr %s202, 2
      %s204 = scalar_lea.vmem %s0, %s203
      %s205 = sadd.s32 %s19, %s20
      %s206 = sadd.s32 %s19, %s20
      %p207 = scmp.lt.s32.totalorder %s18, 1
      %s208 = scalar_select %p207, %s18, 1
      %p209 = scmp.lt.s32.totalorder %s206, 0
      %s210 = scalar_select %p209, %s206, 0
      %s211 = sadd.s32 %s210, %s208
      %s212 = smul.addr %s211, 2
      %s213 = scalar_lea.vmem %s1, %s212
      %s214 = sadd.s32 %s19, %s20
      %p215 = scmp.lt.s32.totalorder %s18, 1
      %s216 = scalar_select %p215, %s18, 1
      %p217 = scmp.lt.s32.totalorder %s19, 0
      %s218 = scalar_select %p217, %s19, 0
      %s219 = sadd.s32 %s218, %s216
      %s220 = smul.addr %s219, 4
      %s221 = scalar_lea.vmem %s2, %s220
      %p222 = scmp.eq.s32.totalorder %s20, 0
      // Predicated region
      $region29: #{dice_loss.1} parent=27 // pred_check
        %p223 = pneg %p222
      $region30: #{dice_loss.1} parent=27 // pred_check_branch
        %225 = sbr.rel (%p223) target = $region32
      $region31: #{dice_loss.1} parent=27 // pred_region
        %226 = vst [vmem:[%s221] sm:$0xf] 0.0
      $region32: #{dice_loss.1} parent=27 // pred_fallthru
        _
      %v227 = vld [vmem:[%s213] sm:$0x3]
      %v228 = vld [vmem:[%s204] sm:$0x3]
      %s229 = scalar_lea.vmem %s204, 2
      %v230 = vld [vmem:[%s229] sm:$0x3]
      %v231 = vsub.f32 %v228, %v230
      %v232 = vmul.f32 %v231, 1.442695
      %v233 = vpow.pop %v232
      %v234 = vadd.f32 %v233, 1.0
      %v235 = vrcp.pop %v234
      %v236 = vmul.f32 1.0, %v235
      %vm237 = vcmp.eq.s32.totalorder %v227, 0
      %vm238 = vcmp.eq.s32.totalorder %v227, 1
      %v239 = vsel %vm237, 1, 0
      %v240 = vcvt.s32.f32 %v239
      %v241 = vsel %vm238, 1, 0
      %v242 = vcvt.s32.f32 %v241
      %v243 = vmul.f32 %v236, %v242
      %vm244 = vcmask 1041408
      %v245 = vsel %vm244, %v243, 0.0
      %v246 = vrot.slane %v245, 4
      %v247 = vadd.f32 %v245, %v246
      %v248 = vrot.slane %v247, 2
      %v249 = vadd.f32 %v247, %v248
      %v250 = vrot.slane %v249, 1
      %v251 = vadd.f32 %v249, %v250
      %v252 = vsel %vm244, %v236, 0.0
      %v253 = vrot.slane %v252, 4
      %v254 = vadd.f32 %v252, %v253
      %v255 = vrot.slane %v254, 2
      %v256 = vadd.f32 %v254, %v255
      %v257 = vrot.slane %v256, 1
      %v258 = vadd.f32 %v256, %v257
      %v259 = vsel %vm244, %v240, 0.0
      %v260 = vrot.slane %v259, 4
      %v261 = vadd.f32 %v259, %v260
      %v262 = vrot.slane %v261, 2
      %v263 = vadd.f32 %v261, %v262
      %v264 = vrot.slane %v263, 1
      %v265 = vadd.f32 %v263, %v264
      %v266 = vsel %vm244, %v242, 0.0
      %v267 = vrot.slane %v266, 4
      %v268 = vadd.f32 %v266, %v267
      %v269 = vrot.slane %v268, 2
      %v270 = vadd.f32 %v268, %v269
      %v271 = vrot.slane %v270, 1
      %v272 = vadd.f32 %v270, %v271
      %v273 = vld [vmem:[%s221] sm:$0xf]
      %vm274 = vcmask 1040384
      %v275 = vsel %vm274, %v251, %v258
      %v276 = vsel %vm244, %v275, %v265
      %vm277 = vcmask 1042432
      %v278 = vsel %vm277, %v276, %v272
      %v279 = vadd.f32 %v273, %v278
      %280 = vst [vmem:[%s221] sm:$0xf] %v279
      %p281 = scmp.lt.s32.totalorder %s18, 1
      %s282 = scalar_select %p281, %s18, 1
      %p283 = scmp.lt.s32.totalorder %s19, 0
      %s284 = scalar_select %p283, %s19, 0
      %s285 = sadd.s32 %s284, %s282
      %s286 = smul.addr %s285, 4
      %s287 = scalar_lea.vmem %s2, %s286
      // Predicated region
      $region33: #{dice_loss.1} parent=27 // pred_check
        %p288 = pneg %p112
      $region34: #{dice_loss.1} parent=27 // pred_check_branch
        %290 = sbr.rel (%p288) target = $region36
      $region35: #{dice_loss.1} parent=27 // pred_region
        _
      $region36: #{dice_loss.1} parent=27 // pred_fallthru
        _
    $region28: #{dice_loss.1} parent=5 // pred_fallthru
      _
    %p291 = scmp.le.s32.totalorder 2, %s8
    // Predicated region
    $region37: #{dice_loss.1} parent=5 // pred_check
      %p292 = pneg %p291
    $region38: #{dice_loss.1} parent=5 // pred_check_branch
      %294 = sbr.rel (%p292) target = $region40
    $region39: #{dice_loss.1} parent=5 // pred_region
      %s295 = ssub.s32 %s8, 2
      // Predicated region
      $region41: #{dice_loss.1} parent=39 // pred_check
        %p296 = pneg %p118
      $region42: #{dice_loss.1} parent=39 // pred_check_branch
        %298 = sbr.rel (%p296) target = $region44
      $region43: #{dice_loss.1} parent=39 // pred_region
        %p299 = scmp.lt.s32.totalorder %s21, 1
        %s300 = scalar_select %p299, %s21, 1
        %p301 = scmp.lt.s32.totalorder %s22, 0
        %s302 = scalar_select %p301, %s22, 0
        %s303 = sadd.s32 %s302, %s300
        %s304 = smul.addr %s303, 4
        %s305 = scalar_lea.vmem %s2, %s304
      $region44: #{dice_loss.1} parent=39 // pred_fallthru
        _
    $region40: #{dice_loss.1} parent=5 // pred_fallthru
      _
  $region6: #{dice_loss.1} parent=0 // loop_footer
    %s12 = sadd.s32 1, %s8
  $region7: #{dice_loss.1} parent=0 // loop_footer_branch
    %7 = sbr.rel target = $region3
  $region8: #{dice_loss.1} parent=0 // loop_exit
    _

</llo_original>
